<compile_context>
chip_gen: v6e
topology: v6e:2x2x1
jax: 0.10.0
libtpu: 0.0.40
codegen_flags: <defaults>
</compile_context>

<pallas_src>
import functools

import jax
import jax.numpy as jnp
from jax import lax
from jax.experimental import pallas as pl
from jax.experimental.pallas import tpu as pltpu

_NEG_SLOPE = 0.2


def _cdiv(a, b):
    return -(-a // b)


def _round_up(a, b):
    return _cdiv(a, b) * b


def _vmem_limit_bytes():
    """Generation-aware VMEM limit: ~48 MiB on v7x (64 MiB/TC), ~96-100 MiB on v5e/v6e."""
    cap = 64 * 1024 * 1024  # conservative fallback (v7x per-TC physical)
    try:
        cap = int(getattr(pltpu.get_tpu_info(), "vmem_capacity_bytes", cap))
    except Exception:
        pass
    return int(min(cap * 3 // 4, 100 * 1024 * 1024))


def _conv_epilogue(acc, b_ref, o_ref, sum_ref, sq_ref, *, add_bias, with_stats, apply_act):
    """Pass-1 epilogue: bias, per-tile BN partial stats (direct stores), LeakyReLU, store."""
    if add_bias:
        acc = acc + b_ref[...]
    if with_stats:
        # Padded M rows and padded C_out lanes are exactly zero on the BN path (no bias),
        # so they contribute nothing; the wrapper divides by the real M and crops C_out
        # before folding (padded lanes never see rsqrt(eps)).
        sum_ref[...] = jnp.sum(acc, axis=0, keepdims=True).reshape(sum_ref.shape)
        sq_ref[...] = jnp.sum(acc * acc, axis=0, keepdims=True).reshape(sq_ref.shape)
    if apply_act:
        acc = jnp.maximum(acc, _NEG_SLOPE * acc)  # LeakyReLU(0.2)
    o_ref[...] = acc.astype(o_ref.dtype)


def _conv_matmul_kernel(*refs, add_bias, with_stats, apply_act, single_k):
    it = iter(refs)
    patches_ref = next(it)                       # (tm, tk)   compute dtype
    w_ref = next(it)                             # (tk, Cp)   compute dtype
    b_ref = next(it) if add_bias else None       # (1, Cp)    f32
    o_ref = next(it)                             # (tm, Cp)   f32 / bf16
    sum_ref = next(it) if with_stats else None   # (1, 1, Cp) f32
    sq_ref = next(it) if with_stats else None    # (1, 1, Cp) f32

    if single_k:
        # Weight resident in VMEM (constant index_map): no accumulator round trip.
        acc = jnp.dot(patches_ref[...], w_ref[...], preferred_element_type=jnp.float32)
        _conv_epilogue(acc, b_ref, o_ref, sum_ref, sq_ref,
                       add_bias=add_bias, with_stats=with_stats, apply_act=apply_act)
    else:
        acc_ref = next(it)                       # (tm, Cp) f32 scratch
        k = pl.program_id(1)

        @pl.when(k == 0)
        def _():
            acc_ref[...] = jnp.zeros_like(acc_ref)

        acc_ref[...] += jnp.dot(patches_ref[...], w_ref[...],
                                preferred_element_type=jnp.float32)

        @pl.when(k == pl.num_programs(1) - 1)
        def _():
            _conv_epilogue(acc_ref[...], b_ref, o_ref, sum_ref, sq_ref,
                           add_bias=add_bias, with_stats=with_stats, apply_act=apply_act)


def _im2col_nhwc(x_nchw, kernel_size, stride, padding):
    """(N,C,H,W) -> (N*Ho*Wo, kh*kw*C) patch matrix, K ordered (kh, kw, c_in) so the
    gather is contiguous along the lane (channel) dim of an NHWC copy."""
    # TODO(synk): a fully fused kernel reading strided NHWC windows per (kh, kw) via a
    # reduction grid axis would remove the materialized ~k*k/stride^2 patch inflation.
    n, c, h, w = x_nchw.shape
    ho = (h + 2 * padding - kernel_size) // stride + 1
    wo = (w + 2 * padding - kernel_size) // stride + 1
    x = jnp.transpose(x_nchw, (0, 2, 3, 1))  # NHWC
    xp = jnp.pad(x, ((0, 0), (padding, padding), (padding, padding), (0, 0)))
    cols = []
    for kh in range(kernel_size):
        for kw in range(kernel_size):
            cols.append(xp[:, kh:kh + stride * ho:stride, kw:kw + stride * wo:stride, :])
    patches = jnp.stack(cols, axis=3)            # (N, Ho, Wo, kh*kw, C)
    patches = patches.reshape(n * ho * wo, kernel_size * kernel_size * c)
    return patches, (n, ho, wo)


def encoder_block_forward(x, weight, bias, gamma=None, beta=None, *,
                          kernel_size=4, stride=2, padding=1,
                          apply_act=True, apply_batch_norm=True, eps=1e-5,
                          compute_dtype=jnp.float32):
    """x: (N, C_in, H, W) f32; weight: (C_out, C_in, kh, kw); bias: (C_out,).
    gamma/beta default to BatchNorm2d init (1, 0).  Train-mode batch statistics."""
    c_out, c_in, kh_, kw_ = weight.shape
    assert kh_ == kernel_size and kw_ == kernel_size

    patches, (n, ho, wo) = _im2col_nhwc(x, kernel_size, stride, padding)
    m, kdim = patches.shape

    compute_dtype = jnp.dtype(compute_dtype)
    dt_bytes = compute_dtype.itemsize
    # bf16 intermediate only when BN re-reads it (stats come from the f32 accumulator).
    if apply_batch_norm and compute_dtype == jnp.dtype(jnp.bfloat16):
        y_dtype = compute_dtype
    else:
        y_dtype = jnp.dtype(jnp.float32)
    y_bytes = jnp.dtype(y_dtype).itemsize
    row_align = 16 if min(dt_bytes, y_bytes) < 4 else 8

    cp = _round_up(c_out, 128)            # lane-dense, MXU-friendly output channels
    kp128 = _round_up(kdim, 128)

    vmem_limit = _vmem_limit_bytes()
    budget = int(vmem_limit * 0.85)       # headroom for compiler-internal scratch

    # --- weight-resident single-K-tile fast path vs. K-tiled accumulator fallback ---
    w_resident = 2 * kp128 * cp * dt_bytes           # conservative: assume double-buffered
    single_k = w_resident <= budget // 2
    if single_k:
        tk = kp = kp128
        n_k = 1
        per_row = 2 * tk * dt_bytes + 2 * cp * y_bytes
        tm_cap = (budget - w_resident) // per_row
    else:
        n_k = _cdiv(kp128, 1024)                     # target ~1024-wide K tiles
        tk = _cdiv(kp128 // 128, n_k) * 128          # evenly divides a tight Kp
        kp = tk * n_k
        per_row = 2 * tk * dt_bytes + 2 * cp * y_bytes + cp * 4   # + f32 acc scratch
        tm_cap = (budget - 2 * tk * cp * dt_bytes) // per_row
    tm_cap = max(row_align, min(2048, (tm_cap // row_align) * row_align))

    n_m = _cdiv(m, tm_cap)
    if n_m == 1 and m >= 1024:
        n_m = 2                                      # keep >=2 M tiles for megacore / v7x 2 TCs
    tm = _round_up(_cdiv(m, n_m), row_align)
    mp = tm * n_m

    # Weight matrix with K ordered (kh, kw, c_in) to match the patch matrix.
    w_mat = jnp.transpose(weight, (2, 3, 1, 0)).reshape(kdim, c_out)
    patches_p = jnp.pad(patches, ((0, mp - m), (0, kp - kdim))).astype(compute_dtype)
    w_p = jnp.pad(w_mat, ((0, kp - kdim), (0, cp - c_out))).astype(compute_dtype)

    add_bias = not apply_batch_norm        # bias cancels exactly under BN mean-subtract
    act_in_pass1 = apply_act and not apply_batch_norm

    if single_k:
        grid = (n_m,)
        dims = ("parallel",)
        p_spec = pl.BlockSpec((tm, tk), lambda i: (i, 0))
        w_spec = pl.BlockSpec((tk, cp), lambda i: (0, 0))      # constant -> DMA'd once
        b_spec = pl.BlockSpec((1, cp), lambda i: (0, 0))
        y_spec = pl.BlockSpec((tm, cp), lambda i: (i, 0))
        s_spec = pl.BlockSpec((1, 1, cp), lambda i: (i, 0, 0))
        scratch = []
    else:
        grid = (n_m, n_k)
        dims = ("parallel", "arbitrary")
        p_spec = pl.BlockSpec((tm, tk), lambda i, k: (i, k))
        w_spec = pl.BlockSpec((tk, cp), lambda i, k: (k, 0))
        b_spec = pl.BlockSpec((1, cp), lambda i, k: (0, 0))
        y_spec = pl.BlockSpec((tm, cp), lambda i, k: (i, 0))
        s_spec = pl.BlockSpec((1, 1, cp), lambda i, k: (i, 0, 0))
        scratch = [pltpu.VMEM((tm, cp), jnp.float32)]

    in_specs = [p_spec, w_spec]
    inputs = [patches_p, w_p]
    if add_bias:
        in_specs.append(b_spec)
        inputs.append(jnp.pad(bias.astype(jnp.float32), (0, cp - c_out)).reshape(1, cp))

    y_struct = jax.ShapeDtypeStruct((mp, cp), y_dtype)
    if apply_batch_norm:
        stats_struct = jax.ShapeDtypeStruct((n_m, 1, cp), jnp.float32)
        out_shape = (y_struct, stats_struct, stats_struct)
        out_specs = (y_spec, s_spec, s_spec)
    else:
        out_shape = y_struct
        out_specs = y_spec

    kernel = functools.partial(_conv_matmul_kernel, add_bias=add_bias,
                               with_stats=apply_batch_norm,
                               apply_act=act_in_pass1, single_k=single_k)
    res = pl.pallas_call(
        kernel,
        out_shape=out_shape,
        grid=grid,
        in_specs=in_specs,
        out_specs=out_specs,
        scratch_shapes=scratch,
        compiler_params=pltpu.CompilerParams(
            dimension_semantics=dims,
            vmem_limit_bytes=vmem_limit),
    )(*inputs)

    if apply_batch_norm:
        y_p, psum, psq = res
        tot = jnp.sum(psum[:, 0, :c_out], axis=0)     # (c_out,)
        tot2 = jnp.sum(psq[:, 0, :c_out], axis=0)
        mean = tot / m
        # NOTE: E[y^2]-E[y]^2 in f32 can cancel when |mean| >> std; clamped at 0.
        # Matches PyTorch's biased batch variance otherwise.
        var = jnp.maximum(tot2 / m - mean * mean, 0.0)
        if gamma is None:
            gamma = jnp.ones((c_out,), jnp.float32)
        if beta is None:
            beta = jnp.zeros((c_out,), jnp.float32)
        scale = gamma.astype(jnp.float32) * lax.rsqrt(var + eps)
        shift = beta.astype(jnp.float32) - mean * scale
        # XLA fuses scale/shift/LeakyReLU with the crop + NCHW relayout below, so the
        # (Mp, Cp) intermediate is read exactly once (no second Pallas pass / extra HBM pass).
        y = y_p[:m, :c_out].astype(jnp.float32) * scale + shift
        if apply_act:
            y = jnp.maximum(y, _NEG_SLOPE * y)
    else:
        y = res[:m, :c_out]

    out = y.reshape(n, ho, wo, c_out).transpose(0, 3, 1, 2)   # NHWC -> NCHW (PyTorch parity)
    return out.astype(jnp.float32)


def _reference_forward(x, weight, bias, *, apply_act=True, apply_batch_norm=True, eps=1e-5):
    y = lax.conv_general_dilated(
        x, weight, window_strides=(2, 2), padding=((1, 1), (1, 1)),
        dimension_numbers=("NCHW", "OIHW", "NCHW"))
    y = y + bias.reshape(1, -1, 1, 1)
    if apply_batch_norm:
        mean = jnp.mean(y, axis=(0, 2, 3), keepdims=True)
        var = jnp.mean((y - mean) ** 2, axis=(0, 2, 3), keepdims=True)
        y = (y - mean) / jnp.sqrt(var + eps)
    if apply_act:
        y = jnp.where(y > 0, y, 0.2 * y)
    return y


if __name__ == "__main__":
    key = jax.random.PRNGKey(0)
    k_x, k_w, k_b = jax.random.split(key, 3)

    N, C_in, H, W = 2, 4, 16, 16
    C_out, K = 8, 4

    x = jax.random.normal(k_x, (N, C_in, H, W), dtype=jnp.float32)
    # torch.nn.init.normal(weight, 0.0, 0.2)
    weight = 0.2 * jax.random.normal(k_w, (C_out, C_in, K, K), dtype=jnp.float32)
    # Conv2d default bias init: U(-1/sqrt(fan_in), 1/sqrt(fan_in))
    fan_in = C_in * K * K
    bound = 1.0 / float(fan_in) ** 0.5
    bias = jax.random.uniform(k_b, (C_out,), dtype=jnp.float32,
                              minval=-bound, maxval=bound)

    fwd = jax.jit(encoder_block_forward,
                  static_argnames=("kernel_size", "stride", "padding", "apply_act",
                                   "apply_batch_norm", "eps", "compute_dtype"))

    ref = _reference_forward(x, weight, bias, apply_act=True, apply_batch_norm=True)

    # f32 MXU path, BN + LeakyReLU (module defaults) — tight tolerance.
    out = jax.block_until_ready(fwd(x, weight, bias,
                                    apply_act=True, apply_batch_norm=True,
                                    compute_dtype=jnp.float32))
    assert out.shape == (N, C_out, H // 2, W // 2), out.shape
    err = float(jnp.max(jnp.abs(out - ref)))
    assert err < 1e-4, err

    # bf16 MXU inputs + bf16 intermediate (perf configuration), f32 stats/epilogue.
    out_bf16 = jax.block_until_ready(fwd(x, weight, bias,
                                         apply_act=True, apply_batch_norm=True,
                                         compute_dtype=jnp.bfloat16))
    err_bf16 = float(jnp.max(jnp.abs(out_bf16 - ref)))
    assert err_bf16 < 5e-2, err_bf16

    # conv + bias + LeakyReLU (no BN) — fully fused single-pass kernel.
    out_nobn = jax.block_until_ready(fwd(x, weight, bias,
                                         apply_act=True, apply_batch_norm=False,
                                         compute_dtype=jnp.float32))
    ref_nobn = _reference_forward(x, weight, bias, apply_act=True, apply_batch_norm=False)
    err_nobn = float(jnp.max(jnp.abs(out_nobn - ref_nobn)))
    assert err_nobn < 1e-4, err_nobn

    print("KERNEL_OK")
</pallas_src>

<mosaic_0001>
module attributes {stable_mosaic.version = 11 : i64} {
  func.func @_conv_matmul_kernel(%arg0: i32, %arg1: memref<128x128xf32, #tpu.memory_space<vmem>>, %arg2: memref<128x128xf32, #tpu.memory_space<vmem>>, %arg3: memref<128x128xf32, #tpu.memory_space<vmem>>, %arg4: memref<1x1x128xf32, #tpu.memory_space<vmem>>, %arg5: memref<1x1x128xf32, #tpu.memory_space<vmem>>) attributes {dimension_semantics = [#tpu.dimension_semantics<parallel>], iteration_bounds = array<i64: 1>, scalar_prefetch = 0 : i64, scratch_operands = 0 : i64, tpu.core_type = #tpu.core_type<tc>, window_params = [{transform_indices = @transform_0, window_bounds = array<i64: 128, 128>}, {pipeline_mode = #tpu.pipeline_mode<synchronous>, transform_indices = @transform_1, window_bounds = array<i64: 128, 128>}, {transform_indices = @transform_2, window_bounds = array<i64: 128, 128>}, {transform_indices = @transform_3, window_bounds = array<i64: 1, 1, 128>}, {transform_indices = @transform_4, window_bounds = array<i64: 1, 1, 128>}]} {
    %c0 = arith.constant 0 : index
    %c0_0 = arith.constant 0 : index
    %0 = vector.load %arg1[%c0, %c0_0] : memref<128x128xf32, #tpu.memory_space<vmem>>, vector<128x128xf32>
    %c0_1 = arith.constant 0 : index
    %c0_2 = arith.constant 0 : index
    %1 = vector.load %arg2[%c0_1, %c0_2] : memref<128x128xf32, #tpu.memory_space<vmem>>, vector<128x128xf32>
    %cst = arith.constant dense<0.000000e+00> : vector<128x128xf32>
    %2 = tpu.matmul %0, %1, %cst {dimension_numbers = #tpu.dot_dimension_numbers<[1], [0], [0], [1], [0, 0, 1, 1], [], []>} : vector<128x128xf32>, vector<128x128xf32>, vector<128x128xf32> -> vector<128x128xf32>
    %cst_3 = arith.constant dense<0.000000e+00> : vector<128xf32>
    %3 = vector.multi_reduction <add>, %2, %cst_3 [0] : vector<128x128xf32> to vector<128xf32>
    %4 = vector.shape_cast %3 : vector<128xf32> to vector<1x128xf32>
    %5 = vector.shape_cast %4 : vector<1x128xf32> to vector<1x1x128xf32>
    %c0_4 = arith.constant 0 : index
    %c0_5 = arith.constant 0 : index
    %c0_6 = arith.constant 0 : index
    %6 = vector.load %arg4[%c0_4, %c0_5, %c0_6] : memref<1x1x128xf32, #tpu.memory_space<vmem>>, vector<1x1x128xf32>
    tpu.vector_store %arg4[%c0_4, %c0_5, %c0_6], %5 {strides = array<i32>} : memref<1x1x128xf32, #tpu.memory_space<vmem>>, vector<1x1x128xf32>,
    %7 = arith.mulf %2, %2 : vector<128x128xf32>
    %cst_7 = arith.constant dense<0.000000e+00> : vector<128xf32>
    %8 = vector.multi_reduction <add>, %7, %cst_7 [0] : vector<128x128xf32> to vector<128xf32>
    %9 = vector.shape_cast %8 : vector<128xf32> to vector<1x128xf32>
    %10 = vector.shape_cast %9 : vector<1x128xf32> to vector<1x1x128xf32>
    %c0_8 = arith.constant 0 : index
    %c0_9 = arith.constant 0 : index
    %c0_10 = arith.constant 0 : index
    %11 = vector.load %arg5[%c0_8, %c0_9, %c0_10] : memref<1x1x128xf32, #tpu.memory_space<vmem>>, vector<1x1x128xf32>
    tpu.vector_store %arg5[%c0_8, %c0_9, %c0_10], %10 {strides = array<i32>} : memref<1x1x128xf32, #tpu.memory_space<vmem>>, vector<1x1x128xf32>,
    %c0_11 = arith.constant 0 : index
    %c0_12 = arith.constant 0 : index
    %12 = vector.load %arg3[%c0_11, %c0_12] : memref<128x128xf32, #tpu.memory_space<vmem>>, vector<128x128xf32>
    tpu.vector_store %arg3[%c0_11, %c0_12], %2 {strides = array<i32>} : memref<128x128xf32, #tpu.memory_space<vmem>>, vector<128x128xf32>,
    return
  }
  func.func @transform_0(%arg0: i32) -> (i32, i32) {
    %c0_i32 = arith.constant 0 : i32
    %c0_i32_0 = arith.constant 0 : i32
    return %arg0, %c0_i32 : i32, i32
  }
  func.func @transform_1(%arg0: i32) -> (i32, i32) {
    %c0_i32 = arith.constant 0 : i32
    %c0_i32_0 = arith.constant 0 : i32
    %c0_i32_1 = arith.constant 0 : i32
    return %c0_i32, %c0_i32_0 : i32, i32
  }
  func.func @transform_2(%arg0: i32) -> (i32, i32) {
    %c0_i32 = arith.constant 0 : i32
    %c0_i32_0 = arith.constant 0 : i32
    return %arg0, %c0_i32 : i32, i32
  }
  func.func @transform_3(%arg0: i32) -> (i32, i32, i32) {
    %c0_i32 = arith.constant 0 : i32
    %c0_i32_0 = arith.constant 0 : i32
    %c0_i32_1 = arith.constant 0 : i32
    return %arg0, %c0_i32, %c0_i32_0 : i32, i32, i32
  }
  func.func @transform_4(%arg0: i32) -> (i32, i32, i32) {
    %c0_i32 = arith.constant 0 : i32
    %c0_i32_0 = arith.constant 0 : i32
    %c0_i32_1 = arith.constant 0 : i32
    return %arg0, %c0_i32, %c0_i32_0 : i32, i32, i32
  }
}

</mosaic_0001>

<llo_original>
// kernel: encoder_block_forward.1
$region0: #{encoder_block_forward.1}
  #allocation0 [shape = 'u32[]', space=smem, size = 0x4, offset = 0x4, fixed_abs, tag = 'smem constant byte address 0x4 - core index']
  #allocation1 [shape = 'u32[144,128]{1,0:T(1,128)}', space=vmem, size = 0x12000, scoped, tag = 'internal scratch']
  %s0 = inlined_call_operand.vmem [shape: f32[128,128], index: 0, kind: input, shape index: {}]
  %s1 = inlined_call_operand.vmem [shape: f32[128,128], index: 1, kind: input, shape index: {}]
  %s2 = inlined_call_operand.vmem [shape: f32[128,128], index: 2, kind: output, shape index: {0}]
  %s3 = inlined_call_operand.vmem [shape: f32[1,1,128], index: 3, kind: output, shape index: {1}]
  %s4 = inlined_call_operand.vmem [shape: f32[1,1,128], index: 4, kind: output, shape index: {2}]
  %5 = xla_tuple %s2, %s3, %s4
  %s6 = sld [smem:[#allocation0]]
  $region34: #{encoder_block_forward.1} parent=0
    _
  %s8 = ssub.s32 1, %s6
  %s9 = scalar_select 0, %s8, %s6
  // Predicated region
  $region2: #{encoder_block_forward.1} parent=0 // pred_check
    _
  $region3: #{encoder_block_forward.1} parent=0 // pred_check_branch
    %11 = sbr.rel (0) target = $region5
  $region4: #{encoder_block_forward.1} parent=0 // pred_region
    _
  $region5: #{encoder_block_forward.1} parent=0 // pred_fallthru
    _
  // Predicated region
  $region6: #{encoder_block_forward.1} parent=0 // pred_check
    _
  $region7: #{encoder_block_forward.1} parent=0 // pred_check_branch
    %13 = sbr.rel (0) target = $region9
  $region8: #{encoder_block_forward.1} parent=0 // pred_region
    _
  $region9: #{encoder_block_forward.1} parent=0 // pred_fallthru
    _
  %v14 = vld [vmem:[%s0] sm:$0xff]
  %v15 = vld [vmem:[%s0 + $0x8] sm:$0xff]
  %v16 = vld [vmem:[%s0 + $0x10] sm:$0xff]
  %v17 = vld [vmem:[%s0 + $0x18] sm:$0xff]
  %v18 = vld [vmem:[%s0 + $0x20] sm:$0xff]
  %v19 = vld [vmem:[%s0 + $0x28] sm:$0xff]
  %v20 = vld [vmem:[%s0 + $0x30] sm:$0xff]
  %v21 = vld [vmem:[%s0 + $0x38] sm:$0xff]
  %v22 = vld [vmem:[%s0 + $0x40] sm:$0xff]
  %v23 = vld [vmem:[%s0 + $0x48] sm:$0xff]
  %v24 = vld [vmem:[%s0 + $0x50] sm:$0xff]
  %v25 = vld [vmem:[%s0 + $0x58] sm:$0xff]
  %v26 = vld [vmem:[%s0 + $0x60] sm:$0xff]
  %v27 = vld [vmem:[%s0 + $0x68] sm:$0xff]
  %v28 = vld [vmem:[%s0 + $0x70] sm:$0xff]
  %v29 = vld [vmem:[%s0 + $0x78] sm:$0xff]
  %v30 = vld [vmem:[%s1] sm:$0xff]
  %v31 = vld [vmem:[%s1 + $0x8] sm:$0xff]
  %v32 = vld [vmem:[%s1 + $0x10] sm:$0xff]
  %v33 = vld [vmem:[%s1 + $0x18] sm:$0xff]
  %v34 = vld [vmem:[%s1 + $0x20] sm:$0xff]
  %v35 = vld [vmem:[%s1 + $0x28] sm:$0xff]
  %v36 = vld [vmem:[%s1 + $0x30] sm:$0xff]
  %v37 = vld [vmem:[%s1 + $0x38] sm:$0xff]
  %v38 = vld [vmem:[%s1 + $0x40] sm:$0xff]
  %v39 = vld [vmem:[%s1 + $0x48] sm:$0xff]
  %v40 = vld [vmem:[%s1 + $0x50] sm:$0xff]
  %v41 = vld [vmem:[%s1 + $0x58] sm:$0xff]
  %v42 = vld [vmem:[%s1 + $0x60] sm:$0xff]
  %v43 = vld [vmem:[%s1 + $0x68] sm:$0xff]
  %v44 = vld [vmem:[%s1 + $0x70] sm:$0xff]
  %v45 = vld [vmem:[%s1 + $0x78] sm:$0xff]
  %46 = vmatprep.subr.mxu0 0.0
  %47 = vmatpush1.msra.mxu0 %v45
  %48 = vmatprep.subr.mxu0 0.0
  %49 = vmatpush1.msra.mxu0 %v44
  %50 = vmatprep.subr.mxu0 0.0
  %51 = vmatpush1.msra.mxu0 %v43
  %52 = vmatprep.subr.mxu0 0.0
  %53 = vmatpush1.msra.mxu0 %v42
  %54 = vmatprep.subr.mxu0 0.0
  %55 = vmatpush1.msra.mxu0 %v41
  %56 = vmatprep.subr.mxu0 0.0
  %57 = vmatpush1.msra.mxu0 %v40
  %58 = vmatprep.subr.mxu0 0.0
  %59 = vmatpush1.msra.mxu0 %v39
  %60 = vmatprep.subr.mxu0 0.0
  %61 = vmatpush1.msra.mxu0 %v38
  %62 = vmatprep.subr.mxu0 0.0
  %63 = vmatpush1.msra.mxu0 %v37
  %64 = vmatprep.subr.mxu0 0.0
  %65 = vmatpush1.msra.mxu0 %v36
  %66 = vmatprep.subr.mxu0 0.0
  %67 = vmatpush1.msra.mxu0 %v35
  %68 = vmatprep.subr.mxu0 0.0
  %69 = vmatpush1.msra.mxu0 %v34
  %70 = vmatprep.subr.mxu0 0.0
  %71 = vmatpush1.msra.mxu0 %v33
  %72 = vmatprep.subr.mxu0 0.0
  %73 = vmatpush1.msra.mxu0 %v32
  %74 = vmatprep.subr.mxu0 0.0
  %75 = vmatpush1.msra.mxu0 %v31
  %76 = vmatprep.subr.mxu0 0.0
  %77 = vmatpush1.msra.mxu0 %v30
  %78 = vmatprep.subr.mxu0 0.0
  %79 = vmatpush2.msra.mxu0 0.0
  %80 = vmatprep.subr.mxu0 0.0
  %81 = vmatpush2.msra.mxu0 0.0
  %82 = vmatprep.subr.mxu0 0.0
  %83 = vmatpush2.msra.mxu0 0.0
  %84 = vmatprep.subr.mxu0 0.0
  %85 = vmatpush2.msra.mxu0 0.0
  %86 = vmatprep.subr.mxu0 0.0
  %87 = vmatpush2.msra.mxu0 0.0
  %88 = vmatprep.subr.mxu0 0.0
  %89 = vmatpush2.msra.mxu0 0.0
  %90 = vmatprep.subr.mxu0 0.0
  %91 = vmatpush2.msra.mxu0 0.0
  %92 = vmatprep.subr.mxu0 0.0
  %93 = vmatpush2.msra.mxu0 0.0
  %94 = vmatprep.subr.mxu0 0.0
  %95 = vmatpush2.msra.mxu0 0.0
  %96 = vmatprep.subr.mxu0 0.0
  %97 = vmatpush2.msra.mxu0 0.0
  %98 = vmatprep.subr.mxu0 0.0
  %99 = vmatpush2.msra.mxu0 0.0
  %100 = vmatprep.subr.mxu0 0.0
  %101 = vmatpush2.msra.mxu0 0.0
  %102 = vmatprep.subr.mxu0 0.0
  %103 = vmatpush2.msra.mxu0 0.0
  %104 = vmatprep.subr.mxu0 0.0
  %105 = vmatpush2.msra.mxu0 0.0
  %106 = vmatprep.subr.mxu0 0.0
  %107 = vmatpush2.msra.mxu0 0.0
  %108 = vmatprep.subr.mxu0 0.0
  %109 = vmatpush2.msra.mxu0 0.0
  %110 = vmatprep.mubr.f32.mxu0 0.0
  %111 = vmatmul.mubr.f32.gmra.mxu0 %v14
  %v112 = vpop.f32.mrf.mxu0
  %v113 = vadd.f32 0.0, %v112
  %v114 = vpop.f32.mrf.mxu0
  %115 = vmatprep.mubr.f32.mxu0 0.0
  %116 = vmatmul.mubr.f32.gmra.mxu0 %v15
  %v117 = vpop.f32.mrf.mxu0
  %v118 = vadd.f32 0.0, %v117
  %v119 = vpop.f32.mrf.mxu0
  %120 = vmatprep.mubr.f32.mxu0 0.0
  %121 = vmatmul.mubr.f32.gmra.mxu0 %v16
  %v122 = vpop.f32.mrf.mxu0
  %v123 = vadd.f32 0.0, %v122
  %v124 = vpop.f32.mrf.mxu0
  %125 = vmatprep.mubr.f32.mxu0 0.0
  %126 = vmatmul.mubr.f32.gmra.mxu0 %v17
  %v127 = vpop.f32.mrf.mxu0
  %v128 = vadd.f32 0.0, %v127
  %v129 = vpop.f32.mrf.mxu0
  %130 = vmatprep.mubr.f32.mxu0 0.0
  %131 = vmatmul.mubr.f32.gmra.mxu0 %v18
  %v132 = vpop.f32.mrf.mxu0
  %v133 = vadd.f32 0.0, %v132
  %v134 = vpop.f32.mrf.mxu0
  %135 = vmatprep.mubr.f32.mxu0 0.0
  %136 = vmatmul.mubr.f32.gmra.mxu0 %v19
  %v137 = vpop.f32.mrf.mxu0
  %v138 = vadd.f32 0.0, %v137
  %v139 = vpop.f32.mrf.mxu0
  %140 = vmatprep.mubr.f32.mxu0 0.0
  %141 = vmatmul.mubr.f32.gmra.mxu0 %v20
  %v142 = vpop.f32.mrf.mxu0
  %v143 = vadd.f32 0.0, %v142
  %v144 = vpop.f32.mrf.mxu0
  %145 = vmatprep.mubr.f32.mxu0 0.0
  %146 = vmatmul.mubr.f32.gmra.mxu0 %v21
  %v147 = vpop.f32.mrf.mxu0
  %v148 = vadd.f32 0.0, %v147
  %v149 = vpop.f32.mrf.mxu0
  %150 = vmatprep.mubr.f32.mxu0 0.0
  %151 = vmatmul.mubr.f32.gmra.mxu0 %v22
  %v152 = vpop.f32.mrf.mxu0
  %v153 = vadd.f32 0.0, %v152
  %v154 = vpop.f32.mrf.mxu0
  %155 = vmatprep.mubr.f32.mxu0 0.0
  %156 = vmatmul.mubr.f32.gmra.mxu0 %v23
  %v157 = vpop.f32.mrf.mxu0
  %v158 = vadd.f32 0.0, %v157
  %v159 = vpop.f32.mrf.mxu0
  %160 = vmatprep.mubr.f32.mxu0 0.0
  %161 = vmatmul.mubr.f32.gmra.mxu0 %v24
  %v162 = vpop.f32.mrf.mxu0
  %v163 = vadd.f32 0.0, %v162
  %v164 = vpop.f32.mrf.mxu0
  %165 = vmatprep.mubr.f32.mxu0 0.0
  %166 = vmatmul.mubr.f32.gmra.mxu0 %v25
  %v167 = vpop.f32.mrf.mxu0
  %v168 = vadd.f32 0.0, %v167
  %v169 = vpop.f32.mrf.mxu0
  %170 = vmatprep.mubr.f32.mxu0 0.0
  %171 = vmatmul.mubr.f32.gmra.mxu0 %v26
  %v172 = vpop.f32.mrf.mxu0
  %v173 = vadd.f32 0.0, %v172
  %v174 = vpop.f32.mrf.mxu0
  %175 = vmatprep.mubr.f32.mxu0 0.0
  %176 = vmatmul.mubr.f32.gmra.mxu0 %v27
  %v177 = vpop.f32.mrf.mxu0
  %v178 = vadd.f32 0.0, %v177
  %v179 = vpop.f32.mrf.mxu0
  %180 = vmatprep.mubr.f32.mxu0 0.0
  %181 = vmatmul.mubr.f32.gmra.mxu0 %v28
  %v182 = vpop.f32.mrf.mxu0
  %v183 = vadd.f32 0.0, %v182
  %v184 = vpop.f32.mrf.mxu0
  %185 = vmatprep.mubr.f32.mxu0 0.0
  %186 = vmatmul.mubr.f32.gmra.mxu0 %v29
  %v187 = vpop.f32.mrf.mxu0
  %v188 = vadd.f32 0.0, %v187
  %v189 = vpop.f32.mrf.mxu0
  %190 = vdwg.mxu0
  %v191 = vadd.f32 %v113, %v118
  %v192 = vadd.f32 %v191, %v123
  %v193 = vadd.f32 %v192, %v128
  %v194 = vadd.f32 %v193, %v133
  %v195 = vadd.f32 %v194, %v138
  %v196 = vadd.f32 %v195, %v143
  %v197 = vadd.f32 %v196, %v148
  %v198 = vadd.f32 %v197, %v153
  %v199 = vadd.f32 %v198, %v158
  %v200 = vadd.f32 %v199, %v163
  %v201 = vadd.f32 %v200, %v168
  %v202 = vadd.f32 %v201, %v173
  %v203 = vadd.f32 %v202, %v178
  %v204 = vadd.f32 %v203, %v183
  %v205 = vadd.f32 %v204, %v188
  %v206 = vrot.slane %v205, 4
  %v207 = vadd.f32 %v205, %v206
  %v208 = vrot.slane %v207, 2
  %v209 = vadd.f32 %v207, %v208
  %v210 = vrot.slane %v209, 1
  %v211 = vadd.f32 %v209, %v210
  %212 = vst [vmem:[%s3] sm:$0x1] %v211
  %v213 = vmul.f32 %v113, %v113
  %v214 = vmul.f32 %v118, %v118
  %v215 = vmul.f32 %v123, %v123
  %v216 = vmul.f32 %v128, %v128
  %v217 = vmul.f32 %v133, %v133
  %v218 = vmul.f32 %v138, %v138
  %v219 = vmul.f32 %v143, %v143
  %v220 = vmul.f32 %v148, %v148
  %v221 = vmul.f32 %v153, %v153
  %v222 = vmul.f32 %v158, %v158
  %v223 = vmul.f32 %v163, %v163
  %v224 = vmul.f32 %v168, %v168
  %v225 = vmul.f32 %v173, %v173
  %v226 = vmul.f32 %v178, %v178
  %v227 = vmul.f32 %v183, %v183
  %v228 = vmul.f32 %v188, %v188
  %v229 = vadd.f32 %v213, %v214
  %v230 = vadd.f32 %v229, %v215
  %v231 = vadd.f32 %v230, %v216
  %v232 = vadd.f32 %v231, %v217
  %v233 = vadd.f32 %v232, %v218
  %v234 = vadd.f32 %v233, %v219
  %v235 = vadd.f32 %v234, %v220
  %v236 = vadd.f32 %v235, %v221
  %v237 = vadd.f32 %v236, %v222
  %v238 = vadd.f32 %v237, %v223
  %v239 = vadd.f32 %v238, %v224
  %v240 = vadd.f32 %v239, %v225
  %v241 = vadd.f32 %v240, %v226
  %v242 = vadd.f32 %v241, %v227
  %v243 = vadd.f32 %v242, %v228
  %v244 = vrot.slane %v243, 4
  %v245 = vadd.f32 %v243, %v244
  %v246 = vrot.slane %v245, 2
  %v247 = vadd.f32 %v245, %v246
  %v248 = vrot.slane %v247, 1
  %v249 = vadd.f32 %v247, %v248
  %250 = vst [vmem:[%s4] sm:$0x1] %v249
  %251 = vst [vmem:[%s2] sm:$0xff] %v113
  %252 = vst [vmem:[%s2 + $0x8] sm:$0xff] %v118
  %253 = vst [vmem:[%s2 + $0x10] sm:$0xff] %v123
  %254 = vst [vmem:[%s2 + $0x18] sm:$0xff] %v128
  %255 = vst [vmem:[%s2 + $0x20] sm:$0xff] %v133
  %256 = vst [vmem:[%s2 + $0x28] sm:$0xff] %v138
  %257 = vst [vmem:[%s2 + $0x30] sm:$0xff] %v143
  %258 = vst [vmem:[%s2 + $0x38] sm:$0xff] %v148
  %259 = vst [vmem:[%s2 + $0x40] sm:$0xff] %v153
  %260 = vst [vmem:[%s2 + $0x48] sm:$0xff] %v158
  %261 = vst [vmem:[%s2 + $0x50] sm:$0xff] %v163
  %262 = vst [vmem:[%s2 + $0x58] sm:$0xff] %v168
  %263 = vst [vmem:[%s2 + $0x60] sm:$0xff] %v173
  %264 = vst [vmem:[%s2 + $0x68] sm:$0xff] %v178
  %265 = vst [vmem:[%s2 + $0x70] sm:$0xff] %v183
  %266 = vst [vmem:[%s2 + $0x78] sm:$0xff] %v188
  // Predicated region
  $region10: #{encoder_block_forward.1} parent=0 // pred_check
    _
  $region11: #{encoder_block_forward.1} parent=0 // pred_check_branch
    %268 = sbr.rel (0) target = $region13
  $region12: #{encoder_block_forward.1} parent=0 // pred_region
    _
  $region13: #{encoder_block_forward.1} parent=0 // pred_fallthru
    _
  // Predicated region
  $region14: #{encoder_block_forward.1} parent=0 // pred_check
    _
  $region15: #{encoder_block_forward.1} parent=0 // pred_check_branch
    %270 = sbr.rel (0) target = $region17
  $region16: #{encoder_block_forward.1} parent=0 // pred_region
    _
  $region17: #{encoder_block_forward.1} parent=0 // pred_fallthru
    _
  // Predicated region
  $region18: #{encoder_block_forward.1} parent=0 // pred_check
    _
  $region19: #{encoder_block_forward.1} parent=0 // pred_check_branch
    %272 = sbr.rel (0) target = $region21
  $region20: #{encoder_block_forward.1} parent=0 // pred_region
    _
  $region21: #{encoder_block_forward.1} parent=0 // pred_fallthru
    _
  // Predicated region
  $region22: #{encoder_block_forward.1} parent=0 // pred_check
    _
  $region23: #{encoder_block_forward.1} parent=0 // pred_check_branch
    %274 = sbr.rel (0) target = $region25
  $region24: #{encoder_block_forward.1} parent=0 // pred_region
    _
  $region25: #{encoder_block_forward.1} parent=0 // pred_fallthru
    _
  // Predicated region
  $region26: #{encoder_block_forward.1} parent=0 // pred_check
    _
  $region27: #{encoder_block_forward.1} parent=0 // pred_check_branch
    %276 = sbr.rel (0) target = $region29
  $region28: #{encoder_block_forward.1} parent=0 // pred_region
    _
  $region29: #{encoder_block_forward.1} parent=0 // pred_fallthru
    _
  // Predicated region
  $region30: #{encoder_block_forward.1} parent=0 // pred_check
    _
  $region31: #{encoder_block_forward.1} parent=0 // pred_check_branch
    %278 = sbr.rel (0) target = $region33
  $region32: #{encoder_block_forward.1} parent=0 // pred_region
    _
  $region33: #{encoder_block_forward.1} parent=0 // pred_fallthru
    _

</llo_original>
